<compile_context>
chip_gen: v7x
topology: tpu7x:2x2x1
jax: 0.10.0
libtpu: 0.0.40
codegen_flags: <defaults>
</compile_context>

<pallas_src>
import jax
import jax.numpy as jnp
from jax.experimental import pallas as pl
from jax.experimental.pallas import tpu as pltpu


def _round_up(x, m):
    return ((x + m - 1) // m) * m


def _encoder_kernel(x_ref, w_ref, b_ref, o_ref):
    # x_ref: (tm, P) compute dtype (bf16/f32)
    # w_ref: (L, P, P) compute dtype, zero-padded per layer
    # b_ref: (L, 1, P) f32, zero-padded
    # o_ref: (tm, P) f32
    h = x_ref[...]
    num_layers = w_ref.shape[0]
    for l in range(num_layers):                       # static unroll over layers
        y = jnp.dot(h.astype(w_ref.dtype), w_ref[l],
                    preferred_element_type=jnp.float32)
        y = y + b_ref[l]                              # (1, P) broadcast, f32
        h = jnp.maximum(y, 0.0)                       # ReLU, keeps padding at 0
    o_ref[...] = h.astype(o_ref.dtype)


def pretrained_encoder_forward(x, params, *, use_bf16=True, max_tm=256):
    """Fused forward pass of the whole Linear+ReLU stack in one Pallas kernel.

    x: (M, input_size) f32
    params: list of (w: (in, out) f32, b: (out,) f32)
    returns: (M, encoder_sizes[-1]) f32
    """
    M, in_size = x.shape
    widths = [in_size] + [w.shape[1] for w, _ in params]
    L = len(params)
    P = _round_up(max(widths), 128)                   # lane-dense common width
    compute_dtype = jnp.bfloat16 if use_bf16 else jnp.float32

    # Zero-pad and stack all layer weights / biases.
    w_stack = jnp.zeros((L, P, P), compute_dtype)
    b_stack = jnp.zeros((L, 1, P), jnp.float32)
    for l, (w, b) in enumerate(params):
        kin, kout = w.shape
        w_stack = w_stack.at[l, :kin, :kout].set(w.astype(compute_dtype))
        b_stack = b_stack.at[l, 0, :kout].set(b.astype(jnp.float32))

    # Row tile: multiple of 16 (bf16 sublane pack), capped at max_tm.
    tm = min(max_tm, _round_up(max(M, 1), 16))
    M_pad = _round_up(M, tm)

    x_pad = jnp.zeros((M_pad, P), compute_dtype)
    x_pad = x_pad.at[:M, :in_size].set(x.astype(compute_dtype))

    grid = (M_pad // tm,)
    itemsize = jnp.dtype(compute_dtype).itemsize
    flops = 2 * M_pad * P * P * L
    bytes_accessed = (M_pad * P * itemsize          # activations in
                      + L * P * P * itemsize        # weights
                      + L * P * 4                   # biases
                      + M_pad * P * 4)              # output

    out = pl.pallas_call(
        _encoder_kernel,
        out_shape=jax.ShapeDtypeStruct((M_pad, P), jnp.float32),
        grid_spec=pl.GridSpec(
            grid=grid,
            in_specs=[
                pl.BlockSpec((tm, P), lambda i: (i, 0)),       # activation row tile
                pl.BlockSpec((L, P, P), lambda i: (0, 0, 0)),  # all weights resident
                pl.BlockSpec((L, 1, P), lambda i: (0, 0, 0)),  # all biases resident
            ],
            out_specs=pl.BlockSpec((tm, P), lambda i: (i, 0)),
        ),
        compiler_params=pltpu.CompilerParams(
            dimension_semantics=("parallel",),
            vmem_limit_bytes=64 * 1024 * 1024,
        ),
        cost_estimate=pl.CostEstimate(
            flops=flops, transcendentals=0, bytes_accessed=bytes_accessed),
    )(x_pad, w_stack, b_stack)

    return out[:M, :widths[-1]]


def init_encoder_params(key, input_size, encoder_sizes):
    """Deterministic synthetic init (PyTorch-Linear-style uniform fan-in)."""
    sizes = [input_size] + list(encoder_sizes)
    params = []
    for i in range(len(sizes) - 1):
        fan_in, fan_out = sizes[i], sizes[i + 1]
        key, kw, kb = jax.random.split(key, 3)
        bound = 1.0 / jnp.sqrt(jnp.asarray(fan_in, jnp.float32))
        w = jax.random.uniform(kw, (fan_in, fan_out), jnp.float32, -bound, bound)
        b = jax.random.uniform(kb, (fan_out,), jnp.float32, -bound, bound)
        params.append((w, b))
    return params


def _reference_forward(x, params, use_bf16=True):
    """Pure-JAX reference mirroring the kernel's compute precision."""
    cd = jnp.bfloat16 if use_bf16 else jnp.float32
    h = x
    for w, b in params:
        y = jnp.dot(h.astype(cd), w.astype(cd),
                    preferred_element_type=jnp.float32) + b
        h = jnp.maximum(y, 0.0)
    return h


if __name__ == "__main__":
    # args.input_size = 32, args.encoder_sizes = [64, 32] (small synthetic config)
    batch = 8                       # deliberately NOT a multiple of the row tile
    input_size = 32
    encoder_sizes = [64, 32]

    key = jax.random.PRNGKey(0)
    key, kx = jax.random.split(key)
    x = jax.random.normal(kx, (batch, input_size), jnp.float32)

    params = init_encoder_params(key, input_size, encoder_sizes)

    out = pretrained_encoder_forward(x, params)
    out = jax.block_until_ready(out)

    ref = _reference_forward(x, params)
    assert out.shape == (batch, encoder_sizes[-1])
    assert jnp.allclose(out, ref, atol=2e-2, rtol=2e-2), (
        float(jnp.max(jnp.abs(out - ref))))

    # TODO(synk): load_partial_params (torch.load of a checkpoint) has no Pallas
    # equivalent and is intentionally omitted; params are synthetic.
    print("KERNEL_OK")
</pallas_src>

<mosaic_0001>
module attributes {stable_mosaic.version = 11 : i64} {
  func.func @_encoder_kernel(%arg0: i32, %arg1: memref<16x128xbf16, #tpu.memory_space<vmem>>, %arg2: memref<2x128x128xbf16, #tpu.memory_space<vmem>>, %arg3: memref<2x1x128xf32, #tpu.memory_space<vmem>>, %arg4: memref<16x128xf32, #tpu.memory_space<vmem>>) attributes {dimension_semantics = [#tpu.dimension_semantics<parallel>], iteration_bounds = array<i64: 1>, scalar_prefetch = 0 : i64, scratch_operands = 0 : i64, tpu.core_type = #tpu.core_type<tc>, window_params = [{transform_indices = @transform_0, window_bounds = array<i64: 16, 128>}, {pipeline_mode = #tpu.pipeline_mode<synchronous>, transform_indices = @transform_1, window_bounds = array<i64: 2, 128, 128>}, {pipeline_mode = #tpu.pipeline_mode<synchronous>, transform_indices = @transform_2, window_bounds = array<i64: 2, 1, 128>}, {transform_indices = @transform_3, window_bounds = array<i64: 16, 128>}]} {
    %c0 = arith.constant 0 : index
    %c0_0 = arith.constant 0 : index
    %0 = vector.load %arg1[%c0, %c0_0] : memref<16x128xbf16, #tpu.memory_space<vmem>>, vector<16x128xbf16>
    %c0_1 = arith.constant 0 : index
    %c0_2 = arith.constant 0 : index
    %c0_3 = arith.constant 0 : index
    %1 = vector.load %arg2[%c0_1, %c0_2, %c0_3] : memref<2x128x128xbf16, #tpu.memory_space<vmem>>, vector<1x128x128xbf16>
    %2 = vector.shape_cast %1 : vector<1x128x128xbf16> to vector<128x128xbf16>
    %cst = arith.constant dense<0.000000e+00> : vector<16x128xf32>
    %3 = tpu.matmul %0, %2, %cst {dimension_numbers = #tpu.dot_dimension_numbers<[1], [0], [0], [1], [0, 0, 1, 1], [], []>} : vector<16x128xbf16>, vector<128x128xbf16>, vector<16x128xf32> -> vector<16x128xf32>
    %c0_4 = arith.constant 0 : index
    %c0_5 = arith.constant 0 : index
    %c0_6 = arith.constant 0 : index
    %4 = vector.load %arg3[%c0_4, %c0_5, %c0_6] : memref<2x1x128xf32, #tpu.memory_space<vmem>>, vector<1x1x128xf32>
    %5 = vector.shape_cast %4 : vector<1x1x128xf32> to vector<1x128xf32>
    %6 = vector.broadcast %5 : vector<1x128xf32> to vector<16x128xf32>
    %7 = arith.addf %3, %6 : vector<16x128xf32>
    %cst_7 = arith.constant 0.000000e+00 : f32
    %8 = vector.broadcast %cst_7 : f32 to vector<16x128xf32>
    %9 = arith.maximumf %7, %8 : vector<16x128xf32>
    %10 = arith.truncf %9 : vector<16x128xf32> to vector<16x128xbf16>
    %c1 = arith.constant 1 : index
    %c0_8 = arith.constant 0 : index
    %c0_9 = arith.constant 0 : index
    %11 = vector.load %arg2[%c1, %c0_8, %c0_9] : memref<2x128x128xbf16, #tpu.memory_space<vmem>>, vector<1x128x128xbf16>
    %12 = vector.shape_cast %11 : vector<1x128x128xbf16> to vector<128x128xbf16>
    %cst_10 = arith.constant dense<0.000000e+00> : vector<16x128xf32>
    %13 = tpu.matmul %10, %12, %cst_10 {dimension_numbers = #tpu.dot_dimension_numbers<[1], [0], [0], [1], [0, 0, 1, 1], [], []>} : vector<16x128xbf16>, vector<128x128xbf16>, vector<16x128xf32> -> vector<16x128xf32>
    %c1_11 = arith.constant 1 : index
    %c0_12 = arith.constant 0 : index
    %c0_13 = arith.constant 0 : index
    %14 = vector.load %arg3[%c1_11, %c0_12, %c0_13] : memref<2x1x128xf32, #tpu.memory_space<vmem>>, vector<1x1x128xf32>
    %15 = vector.shape_cast %14 : vector<1x1x128xf32> to vector<1x128xf32>
    %16 = vector.broadcast %15 : vector<1x128xf32> to vector<16x128xf32>
    %17 = arith.addf %13, %16 : vector<16x128xf32>
    %cst_14 = arith.constant 0.000000e+00 : f32
    %18 = vector.broadcast %cst_14 : f32 to vector<16x128xf32>
    %19 = arith.maximumf %17, %18 : vector<16x128xf32>
    %c0_15 = arith.constant 0 : index
    %c0_16 = arith.constant 0 : index
    %20 = vector.load %arg4[%c0_15, %c0_16] : memref<16x128xf32, #tpu.memory_space<vmem>>, vector<16x128xf32>
    tpu.vector_store %arg4[%c0_15, %c0_16], %19 {strides = array<i32>} : memref<16x128xf32, #tpu.memory_space<vmem>>, vector<16x128xf32>,
    return
  }
  func.func @transform_0(%arg0: i32) -> (i32, i32) {
    %c0_i32 = arith.constant 0 : i32
    %c0_i32_0 = arith.constant 0 : i32
    return %arg0, %c0_i32 : i32, i32
  }
  func.func @transform_1(%arg0: i32) -> (i32, i32, i32) {
    %c0_i32 = arith.constant 0 : i32
    %c0_i32_0 = arith.constant 0 : i32
    %c0_i32_1 = arith.constant 0 : i32
    %c0_i32_2 = arith.constant 0 : i32
    return %c0_i32, %c0_i32_0, %c0_i32_1 : i32, i32, i32
  }
  func.func @transform_2(%arg0: i32) -> (i32, i32, i32) {
    %c0_i32 = arith.constant 0 : i32
    %c0_i32_0 = arith.constant 0 : i32
    %c0_i32_1 = arith.constant 0 : i32
    %c0_i32_2 = arith.constant 0 : i32
    return %c0_i32, %c0_i32_0, %c0_i32_1 : i32, i32, i32
  }
  func.func @transform_3(%arg0: i32) -> (i32, i32) {
    %c0_i32 = arith.constant 0 : i32
    %c0_i32_0 = arith.constant 0 : i32
    return %arg0, %c0_i32 : i32, i32
  }
}

</mosaic_0001>

<llo_original>
// kernel: tpu_custom_call.1
$region0: #{tpu_custom_call.1}
  #allocation0 [shape = 'u32[]', space=smem, size = 0x4, offset = 0x4, fixed_abs, tag = 'smem constant byte address 0x4 - core index']
  #allocation1 [shape = 'u32[144,128]{1,0:T(1,128)}', space=vmem, size = 0x12000, scoped, tag = 'internal scratch']
  %s0 = inlined_call_operand.hbm [shape: bf16[16,128], index: 0, kind: input, shape index: {}]
  %s1 = inlined_call_operand.hbm [shape: bf16[2,128,128], index: 1, kind: input, shape index: {}]
  %s2 = inlined_call_operand.hbm [shape: f32[2,1,128], index: 2, kind: input, shape index: {}]
  %s3 = inlined_call_operand.hbm [shape: f32[16,128], index: 3, kind: output, shape index: {}]
  %s4 = sld [smem:[#allocation0]]
  $region34: #{tpu_custom_call.1} parent=0
    _
  %s6 = ssub.s32 1, %s4
  %s7 = scalar_select 0, %s6, %s4
  $region1: #{tpu_custom_call.1} parent=0
    #allocation2 [shape = 'u8[4096]{0}', space=vmem, size = 0x1000, scoped, tag = 'input window, operand 0, single buffered']
    #allocation3 [shape = 's32[1]{0}', space=sflag, size = 0x4, scoped, tag = 'scoped memory for tpu_custom_call.1']
    #allocation4 [shape = 's32[1]{0}', space=sflag, size = 0x4, scoped, tag = 'scoped memory for tpu_custom_call.1']
    #allocation5 [shape = 'u8[65536]{0}', space=vmem, size = 0x10000, scoped, tag = 'input window, operand 1, single buffered']
    #allocation6 [shape = 's32[1]{0}', space=sflag, size = 0x4, scoped, tag = 'scoped memory for tpu_custom_call.1']
    #allocation7 [shape = 'u8[1024]{0}', space=vmem, size = 0x400, scoped, tag = 'input window, operand 2, single buffered']
    #allocation8 [shape = 'u8[8192]{0}', space=vmem, size = 0x2000, scoped, tag = 'output window, operand 0, single buffered']
    %8 = vsyncpa [#allocation3], 0
    %9 = vsyncpa [#allocation6], 0
    %10 = vsyncpa [#allocation4], 0
    // Predicated region
    $region2: #{tpu_custom_call.1} parent=1 // pred_check
      _
    $region3: #{tpu_custom_call.1} parent=1 // pred_check_branch
      %12 = sbr.rel (0) target = $region5
    $region4: #{tpu_custom_call.1} parent=1 // pred_region
      %s14 = ssub.s32 128, 128
      %15 = vsyncadd [#allocation3], %s14
      %s16 = sshll.u32 [#allocation2], 4
      %s17 = int_to_ptr.vmem [resolvable:$true] %s16
      %22 = dma.hbm_to_vmem [thread:$0]  %s0, 128, %s17, [#allocation3], 64, 64, 4
    $region5: #{tpu_custom_call.1} parent=1 // pred_fallthru
      _
    // Predicated region
    $region6: #{tpu_custom_call.1} parent=1 // pred_check
      _
    $region7: #{tpu_custom_call.1} parent=1 // pred_check_branch
      %24 = sbr.rel (0) target = $region9
    $region8: #{tpu_custom_call.1} parent=1 // pred_region
      %s26 = ssub.s32 2048, 2048
      %27 = vsyncadd [#allocation6], %s26
      %s28 = sshll.u32 [#allocation5], 4
      %s29 = int_to_ptr.vmem [resolvable:$true] %s28
      %34 = dma.hbm_to_vmem [thread:$0]  %s1, 2048, %s29, [#allocation6], 64, 64, 4
    $region9: #{tpu_custom_call.1} parent=1 // pred_fallthru
      _
    // Predicated region
    $region10: #{tpu_custom_call.1} parent=1 // pred_check
      _
    $region11: #{tpu_custom_call.1} parent=1 // pred_check_branch
      %36 = sbr.rel (0) target = $region13
    $region12: #{tpu_custom_call.1} parent=1 // pred_region
      %s38 = ssub.s32 32, 32
      %39 = vsyncadd [#allocation6], %s38
      %s40 = sshll.u32 [#allocation7], 4
      %s41 = int_to_ptr.vmem [resolvable:$true] %s40
      %46 = dma.hbm_to_vmem [thread:$0]  %s2, 32, %s41, [#allocation6], 16, 16, 1
    $region13: #{tpu_custom_call.1} parent=1 // pred_fallthru
      _
    // Predicated region
    $region14: #{tpu_custom_call.1} parent=1 // pred_check
      _
    $region15: #{tpu_custom_call.1} parent=1 // pred_check_branch
      %48 = sbr.rel (0) target = $region17
    $region16: #{tpu_custom_call.1} parent=1 // pred_region
      %49 = dma.done [#allocation3], 128
    $region17: #{tpu_custom_call.1} parent=1 // pred_fallthru
      _
    // Predicated region
    $region18: #{tpu_custom_call.1} parent=1 // pred_check
      _
    $region19: #{tpu_custom_call.1} parent=1 // pred_check_branch
      %51 = sbr.rel (0) target = $region21
    $region20: #{tpu_custom_call.1} parent=1 // pred_region
      %52 = dma.done [#allocation6], 2048
    $region21: #{tpu_custom_call.1} parent=1 // pred_fallthru
      _
    // Predicated region
    $region22: #{tpu_custom_call.1} parent=1 // pred_check
      _
    $region23: #{tpu_custom_call.1} parent=1 // pred_check_branch
      %54 = sbr.rel (0) target = $region25
    $region24: #{tpu_custom_call.1} parent=1 // pred_region
      %55 = dma.done [#allocation6], 32
    $region25: #{tpu_custom_call.1} parent=1 // pred_fallthru
      _
    %v57 = vld [vmem:[#allocation2] sm:$0xf]
    %v58 = vld [vmem:[#allocation2 + $0x4] sm:$0xf]
    %v59 = vld [vmem:[#allocation5] sm:$0xf]
    %v60 = vld [vmem:[#allocation5 + $0x4] sm:$0xf]
    %v61 = vld [vmem:[#allocation5 + $0x8] sm:$0xf]
    %v62 = vld [vmem:[#allocation5 + $0xc] sm:$0xf]
    %v63 = vld [vmem:[#allocation5 + $0x10] sm:$0xf]
    %v64 = vld [vmem:[#allocation5 + $0x14] sm:$0xf]
    %v65 = vld [vmem:[#allocation5 + $0x18] sm:$0xf]
    %v66 = vld [vmem:[#allocation5 + $0x1c] sm:$0xf]
    %v67 = vld [vmem:[#allocation5 + $0x20] sm:$0xf]
    %v68 = vld [vmem:[#allocation5 + $0x24] sm:$0xf]
    %v69 = vld [vmem:[#allocation5 + $0x28] sm:$0xf]
    %v70 = vld [vmem:[#allocation5 + $0x2c] sm:$0xf]
    %v71 = vld [vmem:[#allocation5 + $0x30] sm:$0xf]
    %v72 = vld [vmem:[#allocation5 + $0x34] sm:$0xf]
    %v73 = vld [vmem:[#allocation5 + $0x38] sm:$0xf]
    %v74 = vld [vmem:[#allocation5 + $0x3c] sm:$0xf]
    %v75 = vld [vmem:[#allocation7] sm:$0x1]
    %v77 = vlaneseq
    %v78 = vshrl.u32 %v77, 7
    %v79 = vsub.s32 0, %v78
    %v80 = vrot.slane %v75, %v79
    %v84 = vunpack.c.l.b16 %v57
    %v85 = vunpack.c.l.b16 %v58
    %v86 = vpack.c.b16 %v85, %v84
    %v104 = vunpack.c.l.b16 %v59
    %v105 = vunpack.c.l.b16 %v60
    %v106 = vunpack.c.l.b16 %v61
    %v107 = vunpack.c.l.b16 %v62
    %v108 = vunpack.c.l.b16 %v63
    %v109 = vunpack.c.l.b16 %v64
    %v110 = vunpack.c.l.b16 %v65
    %v111 = vunpack.c.l.b16 %v66
    %v112 = vunpack.c.l.b16 %v67
    %v113 = vunpack.c.l.b16 %v68
    %v114 = vunpack.c.l.b16 %v69
    %v115 = vunpack.c.l.b16 %v70
    %v116 = vunpack.c.l.b16 %v71
    %v117 = vunpack.c.l.b16 %v72
    %v118 = vunpack.c.l.b16 %v73
    %v119 = vunpack.c.l.b16 %v74
    %v120 = vpack.c.b16 %v105, %v104
    %v121 = vpack.c.b16 %v107, %v106
    %v122 = vpack.c.b16 %v109, %v108
    %v123 = vpack.c.b16 %v111, %v110
    %v124 = vpack.c.b16 %v113, %v112
    %v125 = vpack.c.b16 %v115, %v114
    %v126 = vpack.c.b16 %v117, %v116
    %v127 = vpack.c.b16 %v119, %v118
    %136 = vmatprep.subr.bf16.mxu0 0
    %137 = vmatpush1.bf16.msra.mxu0 %v120
    %138 = vmatprep.subr.bf16.mxu0 0
    %139 = vmatpush1.bf16.msra.mxu0 %v121
    %140 = vmatprep.subr.bf16.mxu0 0
    %141 = vmatpush1.bf16.msra.mxu0 %v122
    %142 = vmatprep.subr.bf16.mxu0 0
    %143 = vmatpush1.bf16.msra.mxu0 %v123
    %144 = vmatprep.subr.bf16.mxu0 0
    %145 = vmatpush1.bf16.msra.mxu0 %v124
    %146 = vmatprep.subr.bf16.mxu0 0
    %147 = vmatpush1.bf16.msra.mxu0 %v125
    %148 = vmatprep.subr.bf16.mxu0 0
    %149 = vmatpush1.bf16.msra.mxu0 %v126
    %150 = vmatprep.subr.bf16.mxu0 0
    %151 = vmatpush1.bf16.msra.mxu0 %v127
    %152 = vmatprep.subr.bf16.mxu0 0
    %153 = vmatpush1.bf16.msra.mxu0 0
    %154 = vmatprep.subr.bf16.mxu0 0
    %155 = vmatpush1.bf16.msra.mxu0 0
    %156 = vmatprep.subr.bf16.mxu0 0
    %157 = vmatpush1.bf16.msra.mxu0 0
    %158 = vmatprep.subr.bf16.mxu0 0
    %159 = vmatpush1.bf16.msra.mxu0 0
    %160 = vmatprep.subr.bf16.mxu0 0
    %161 = vmatpush1.bf16.msra.mxu0 0
    %162 = vmatprep.subr.bf16.mxu0 0
    %163 = vmatpush1.bf16.msra.mxu0 0
    %164 = vmatprep.subr.bf16.mxu0 0
    %165 = vmatpush1.bf16.msra.mxu0 0
    %166 = vmatprep.subr.bf16.mxu0 0
    %167 = vmatpush1.bf16.msra.mxu0 0
    %168 = vmatprep.mubr.bf16.mxu0 0
    %169 = vmatmul.mubr.bf16.gmra.mrb[0].mxu0 %v86
    %v170 = vpop.f32.mrb[0].mxu0
    %v171 = vadd.f32 %v80, %v170
    %v172 = vpop.f32.mrb[0].mxu0
    %v173 = vpop.f32.mrb[0].mxu0
    %v174 = vadd.f32 %v80, %v173
    %v175 = vpop.f32.mrb[0].mxu0
    %176 = vdwg.mxu0
    %v177 = vmax.f32 %v171, 0.0
    %v178 = vmax.f32 %v174, 0.0
    %v179 = vpack.c.bf16 %v178, %v177
    %s180 = scalar_lea.vmem [#allocation5], 64
    %v181 = vld [vmem:[%s180] sm:$0xf]
    %v182 = vld [vmem:[%s180 + $0x4] sm:$0xf]
    %v183 = vld [vmem:[%s180 + $0x8] sm:$0xf]
    %v184 = vld [vmem:[%s180 + $0xc] sm:$0xf]
    %v185 = vld [vmem:[%s180 + $0x10] sm:$0xf]
    %v186 = vld [vmem:[%s180 + $0x14] sm:$0xf]
    %v187 = vld [vmem:[%s180 + $0x18] sm:$0xf]
    %v188 = vld [vmem:[%s180 + $0x1c] sm:$0xf]
    %v189 = vld [vmem:[%s180 + $0x20] sm:$0xf]
    %v190 = vld [vmem:[%s180 + $0x24] sm:$0xf]
    %v191 = vld [vmem:[%s180 + $0x28] sm:$0xf]
    %v192 = vld [vmem:[%s180 + $0x2c] sm:$0xf]
    %v193 = vld [vmem:[%s180 + $0x30] sm:$0xf]
    %v194 = vld [vmem:[%s180 + $0x34] sm:$0xf]
    %v195 = vld [vmem:[%s180 + $0x38] sm:$0xf]
    %v196 = vld [vmem:[%s180 + $0x3c] sm:$0xf]
    %s197 = scalar_lea.vmem [#allocation7], 1
    %v198 = vld [vmem:[%s197] sm:$0x1]
    %v200 = vlaneseq
    %v201 = vshrl.u32 %v200, 7
    %v202 = vsub.s32 0, %v201
    %v203 = vrot.slane %v198, %v202
    %v221 = vunpack.c.l.b16 %v181
    %v222 = vunpack.c.l.b16 %v182
    %v223 = vunpack.c.l.b16 %v183
    %v224 = vunpack.c.l.b16 %v184
    %v225 = vunpack.c.l.b16 %v185
    %v226 = vunpack.c.l.b16 %v186
    %v227 = vunpack.c.l.b16 %v187
    %v228 = vunpack.c.l.b16 %v188
    %v229 = vunpack.c.l.b16 %v189
    %v230 = vunpack.c.l.b16 %v190
    %v231 = vunpack.c.l.b16 %v191
    %v232 = vunpack.c.l.b16 %v192
    %v233 = vunpack.c.l.b16 %v193
    %v234 = vunpack.c.l.b16 %v194
    %v235 = vunpack.c.l.b16 %v195
    %v236 = vunpack.c.l.b16 %v196
    %v237 = vpack.c.b16 %v222, %v221
    %v238 = vpack.c.b16 %v224, %v223
    %v239 = vpack.c.b16 %v226, %v225
    %v240 = vpack.c.b16 %v228, %v227
    %v241 = vpack.c.b16 %v230, %v229
    %v242 = vpack.c.b16 %v232, %v231
    %v243 = vpack.c.b16 %v234, %v233
    %v244 = vpack.c.b16 %v236, %v235
    %253 = vmatprep.subr.bf16.mxu0 0
    %254 = vmatpush1.bf16.msra.mxu0 %v237
    %255 = vmatprep.subr.bf16.mxu0 0
    %256 = vmatpush1.bf16.msra.mxu0 %v238
    %257 = vmatprep.subr.bf16.mxu0 0
    %258 = vmatpush1.bf16.msra.mxu0 %v239
    %259 = vmatprep.subr.bf16.mxu0 0
    %260 = vmatpush1.bf16.msra.mxu0 %v240
    %261 = vmatprep.subr.bf16.mxu0 0
    %262 = vmatpush1.bf16.msra.mxu0 %v241
    %263 = vmatprep.subr.bf16.mxu0 0
    %264 = vmatpush1.bf16.msra.mxu0 %v242
    %265 = vmatprep.subr.bf16.mxu0 0
    %266 = vmatpush1.bf16.msra.mxu0 %v243
    %267 = vmatprep.subr.bf16.mxu0 0
    %268 = vmatpush1.bf16.msra.mxu0 %v244
    %269 = vmatprep.subr.bf16.mxu0 0
    %270 = vmatpush1.bf16.msra.mxu0 0
    %271 = vmatprep.subr.bf16.mxu0 0
    %272 = vmatpush1.bf16.msra.mxu0 0
    %273 = vmatprep.subr.bf16.mxu0 0
    %274 = vmatpush1.bf16.msra.mxu0 0
    %275 = vmatprep.subr.bf16.mxu0 0
    %276 = vmatpush1.bf16.msra.mxu0 0
    %277 = vmatprep.subr.bf16.mxu0 0
    %278 = vmatpush1.bf16.msra.mxu0 0
    %279 = vmatprep.subr.bf16.mxu0 0
    %280 = vmatpush1.bf16.msra.mxu0 0
    %281 = vmatprep.subr.bf16.mxu0 0
    %282 = vmatpush1.bf16.msra.mxu0 0
    %283 = vmatprep.subr.bf16.mxu0 0
    %284 = vmatpush1.bf16.msra.mxu0 0
    %285 = vmatprep.mubr.bf16.mxu0 0
    %286 = vmatmul.mubr.bf16.gmra.mrb[0].mxu0 %v179
    %v287 = vpop.f32.mrb[0].mxu0
    %v288 = vadd.f32 %v203, %v287
    %v289 = vpop.f32.mrb[0].mxu0
    %v290 = vpop.f32.mrb[0].mxu0
    %v291 = vadd.f32 %v203, %v290
    %v292 = vpop.f32.mrb[0].mxu0
    %293 = vdwg.mxu0
    %v294 = vmax.f32 %v288, 0.0
    %v295 = vmax.f32 %v291, 0.0
    %296 = vst [vmem:[#allocation8] sm:$0xff] %v294
    %297 = vst [vmem:[#allocation8 + $0x8] sm:$0xff] %v295
    // Predicated region
    $region26: #{tpu_custom_call.1} parent=1 // pred_check
      _
    $region27: #{tpu_custom_call.1} parent=1 // pred_check_branch
      %299 = sbr.rel (0) target = $region29
    $region28: #{tpu_custom_call.1} parent=1 // pred_region
      %s301 = ssub.s32 256, 256
      %302 = vsyncadd [#allocation4], %s301
      %s303 = sshll.u32 [#allocation8], 4
      %s304 = int_to_ptr.vmem [resolvable:$true] %s303
      %309 = dma.vmem_to_hbm [thread:$0]  %s304, 256, %s3, [#allocation4], 128, 128, 8
    $region29: #{tpu_custom_call.1} parent=1 // pred_fallthru
      _
    // Predicated region
    $region30: #{tpu_custom_call.1} parent=1 // pred_check
      _
    $region31: #{tpu_custom_call.1} parent=1 // pred_check_branch
      %311 = sbr.rel (0) target = $region33
    $region32: #{tpu_custom_call.1} parent=1 // pred_region
      %312 = dma.done [#allocation4], 256
    $region33: #{tpu_custom_call.1} parent=1 // pred_fallthru
      _
    %313 = vsyncpa [#allocation3], 1
    %314 = vsyncpa [#allocation6], 1
    %315 = vsyncpa [#allocation4], 1

</llo_original>
